<compile_context>
chip_gen: v6e
topology: v6e:2x2x1
jax: 0.10.0
libtpu: 0.0.40
codegen_flags: <defaults>
</compile_context>

<pallas_src>
import math

import jax
import jax.numpy as jnp
from jax import lax
from jax.experimental import pallas as pl
from jax.experimental.pallas import tpu as pltpu


# ----------------------------------------------------------------------------
# Parameter construction (mirrors torch gaussian_kernel / GaussianConv2d.__init__)
# ----------------------------------------------------------------------------
def gaussian_kernel(size: int, mean: float, std: float) -> jnp.ndarray:
    """2D Gaussian kernel, identical to the torch.distributions.Normal version."""
    x = jnp.arange(size, dtype=jnp.float32)
    vals = -0.5 * ((x - mean) / std) ** 2 - jnp.log(std) - 0.5 * math.log(2.0 * math.pi)
    grid = jnp.exp(vals[:, None] + vals[None, :])
    grid = grid / jnp.sum(grid)
    return grid  # (size, size) float32


# ----------------------------------------------------------------------------
# Pallas kernel (built with static shape parameters closed over)
# ----------------------------------------------------------------------------
def _make_kernel(K: int, W: int, HW: int, cin: int, nb: int):
    pad = (K - 1) // 2

    def kernel(k1_ref, b_ref, x_ref, o_ref):
        # k1_ref: (K,)        float32, SMEM  (separable 1D taps)
        # b_ref : (Cout, 1)   float32, VMEM
        # x_ref : (nb, Cin, HW)        VMEM
        # o_ref : (nb, Cout, HW)       VMEM
        x = x_ref[...].astype(jnp.float32)                 # (nb, Cin, HW)
        # Identical weights across input channels -> fold the Cin reduction first.
        xs = x[:, 0, :] if cin == 1 else jnp.sum(x, axis=1)  # (nb, HW)

        def shift_rows(v, d):
            # result[i] = v[i + d] along the flat axis, zero-filled past the ends.
            # d is a multiple of W (whole rows) -> no intra-row seam to mask.
            if d > 0:
                return jnp.concatenate(
                    [v[:, d:], jnp.zeros((nb, d), jnp.float32)], axis=1)
            return jnp.concatenate(
                [jnp.zeros((nb, -d), jnp.float32), v[:, :HW + d]], axis=1)

        # ---- vertical (row) pass: shifts by whole rows in the flat layout ----
        t = k1_ref[pad] * xs
        for i in range(K):
            d = (i - pad) * W
            if d == 0:
                continue
            t = t + k1_ref[i] * shift_rows(xs, d)

        # ---- horizontal (column) pass: shifts within a row, mask row seams ----
        col = lax.broadcasted_iota(jnp.int32, (nb, HW), 1) % W
        out = k1_ref[pad] * t
        for i in range(K):
            d = i - pad
            if d == 0:
                continue
            sh = shift_rows(t, d)                           # flat shift by d
            if d > 0:
                sh = jnp.where(col < W - d, sh, 0.0)        # kill next-row leak
            else:
                sh = jnp.where(col >= -d, sh, 0.0)          # kill prev-row leak
            out = out + k1_ref[i] * sh

        # Identical weights across output channels -> one broadcast store with
        # per-channel bias folded in (no per-Cout store loop).
        b = b_ref[...]                                      # (Cout, 1)
        o_ref[...] = (out[:, None, :] + b[None, :, :]).astype(o_ref.dtype)

    return kernel


# ----------------------------------------------------------------------------
# Wrapper
# ----------------------------------------------------------------------------
def _pick_batch_tile(n: int, per_elem_bytes: int,
                     budget_bytes: int = 12 * 1024 * 1024) -> int:
    """Largest batch tile (divisor of n) fitting the VMEM budget; keep >=2 grid
    steps when possible so v7x's two TensorCores both get work."""
    divisors = [d for d in range(1, n + 1) if n % d == 0]
    fit = [d for d in divisors if d * per_elem_bytes <= budget_bytes] or [1]
    nb = max(fit)
    if n > 1 and nb == n and len(fit) > 1:
        nb = max(d for d in fit if d < n)
    return nb


def gaussian_conv2d(x, weights, bias, *, stride=1, padding=1):
    """x: (N, Cin, H, W) float32.  weights: (K, K) Gaussian.  bias: (Cout,)."""
    N, Cin, H, W = x.shape
    K = weights.shape[0]
    Cout = bias.shape[0]
    # TODO(synk): only stride=1 with 'same' padding ((K-1)//2) implemented
    # (the module defaults); general stride/padding would need a strided store
    # and explicit output-size handling.
    assert stride == 1 and 2 * padding == K - 1
    HW = H * W

    # Separable factorization of the Gaussian weight: weights == outer(k1, k1)
    # exactly (rank-1, rows sum to the 1D taps since the kernel is normalized).
    # TODO(synk): if the trained weights ever become non-separable, fall back
    # to the full (K,K) tap loop.
    k1 = weights.astype(jnp.float32).sum(axis=1)            # (K,)
    bias_v = bias.astype(jnp.float32).reshape(Cout, 1)      # (Cout, 1) -> VMEM

    # Lane-dense layout: fold (H, W) into one flat trailing axis (free reshape,
    # input is contiguous).  No jnp.pad -> no extra HBM round trip.
    x_flat = x.reshape(N, Cin, HW)

    # VMEM sizing: double-buffered in/out blocks + ~8 HW-sized f32 temporaries.
    per_elem_bytes = 4 * HW * (2 * Cin + 2 * Cout + 8)
    Nb = _pick_batch_tile(N, per_elem_bytes)
    grid = (N // Nb,)

    # TODO(synk): for large H*W or Cout the per-image block should additionally
    # be tiled over rows (with a 1-row halo) and over Cout; unnecessary at the
    # small shapes this module is used with.
    out_flat = pl.pallas_call(
        _make_kernel(K, W, HW, Cin, Nb),
        out_shape=jax.ShapeDtypeStruct((N, Cout, HW), x.dtype),
        grid_spec=pltpu.PrefetchScalarGridSpec(
            num_scalar_prefetch=0,
            grid=grid,
            in_specs=[
                pl.BlockSpec(memory_space=pltpu.MemorySpace.SMEM),   # k1 (K,)
                pl.BlockSpec((Cout, 1), lambda n: (0, 0)),           # bias
                pl.BlockSpec((Nb, Cin, HW), lambda n: (n, 0, 0)),    # x
            ],
            out_specs=pl.BlockSpec((Nb, Cout, HW), lambda n: (n, 0, 0)),
        ),
        compiler_params=pltpu.CompilerParams(
            dimension_semantics=("parallel",),
            vmem_limit_bytes=32 * 1024 * 1024,
        ),
    )(k1, bias_v, x_flat)

    return out_flat.reshape(N, Cout, H, W)


# ----------------------------------------------------------------------------
# Demo / correctness check
# ----------------------------------------------------------------------------
if __name__ == "__main__":
    in_channels, out_channels, kernel_size, padding = 4, 4, 3, 1
    N, H, W = 2, 16, 16

    weights = gaussian_kernel(kernel_size, mean=0.0, std=1.0)       # (3, 3)

    key = jax.random.PRNGKey(0)
    kx, kb = jax.random.split(key)
    x = jax.random.normal(kx, (N, in_channels, H, W), dtype=jnp.float32)
    # Module initializes bias to zeros; use a small nonzero bias here to
    # exercise the per-channel bias path (forward semantics are unchanged).
    bias = 0.1 * jax.random.normal(kb, (out_channels,), dtype=jnp.float32)

    out = gaussian_conv2d(x, weights, bias, stride=1, padding=padding)
    out = jax.block_until_ready(out)

    # Reference: plain-JAX conv2d matching F.conv2d semantics of the module.
    w_full = jnp.broadcast_to(weights[None, None],
                              (out_channels, in_channels, kernel_size, kernel_size))
    ref = jax.lax.conv_general_dilated(
        x, w_full, window_strides=(1, 1),
        padding=[(padding, padding), (padding, padding)],
        dimension_numbers=("NCHW", "OIHW", "NCHW"),
    ) + bias[None, :, None, None]

    assert out.shape == (N, out_channels, H, W)
    assert jnp.allclose(out, ref, atol=1e-5, rtol=1e-5), float(
        jnp.max(jnp.abs(out - ref)))
    print("KERNEL_OK")
</pallas_src>

<mosaic_0001>
module attributes {stable_mosaic.version = 11 : i64} {
  func.func @kernel(%arg0: i32, %arg1: memref<3xf32, #tpu.memory_space<smem>>, %arg2: memref<4x1xf32, #tpu.memory_space<vmem>>, %arg3: memref<1x4x256xf32, #tpu.memory_space<vmem>>, %arg4: memref<1x4x256xf32, #tpu.memory_space<vmem>>) attributes {dimension_semantics = [#tpu.dimension_semantics<parallel>], iteration_bounds = array<i64: 2>, scalar_prefetch = 0 : i64, scratch_operands = 0 : i64, tpu.core_type = #tpu.core_type<tc>, window_params = [{transform_indices = @transform_0, window_bounds = array<i64: 3>}, {pipeline_mode = #tpu.pipeline_mode<synchronous>, transform_indices = @transform_1, window_bounds = array<i64: 4, 1>}, {transform_indices = @transform_2, window_bounds = array<i64: 1, 4, 256>}, {transform_indices = @transform_3, window_bounds = array<i64: 1, 4, 256>}]} {
    %c0 = arith.constant 0 : index
    %c0_0 = arith.constant 0 : index
    %c0_1 = arith.constant 0 : index
    %0 = vector.load %arg3[%c0, %c0_0, %c0_1] : memref<1x4x256xf32, #tpu.memory_space<vmem>>, vector<1x4x256xf32>
    %cst = arith.constant dense<0.000000e+00> : vector<1x256xf32>
    %1 = vector.multi_reduction <add>, %0, %cst [1] : vector<1x4x256xf32> to vector<1x256xf32>
    %c1 = arith.constant 1 : index
    %2 = memref.load %arg1[%c1] : memref<3xf32, #tpu.memory_space<smem>>
    %3 = vector.broadcast %2 : f32 to vector<1x256xf32>
    %4 = arith.mulf %3, %1 : vector<1x256xf32>
    %c0_2 = arith.constant 0 : index
    %5 = memref.load %arg1[%c0_2] : memref<3xf32, #tpu.memory_space<smem>>
    %cst_3 = arith.constant 0.000000e+00 : f32
    %6 = vector.broadcast %cst_3 : f32 to vector<1x16xf32>
    %7 = vector.extract_strided_slice %1 {offsets = [0, 0], sizes = [1, 240], strides = [1, 1]} : vector<1x256xf32> to vector<1x240xf32>
    %8 = tpu.concatenate %6, %7 in 1 : vector<1x16xf32>, vector<1x240xf32> -> vector<1x256xf32>
    %9 = vector.broadcast %5 : f32 to vector<1x256xf32>
    %10 = arith.mulf %9, %8 : vector<1x256xf32>
    %11 = arith.addf %4, %10 : vector<1x256xf32>
    %c2 = arith.constant 2 : index
    %12 = memref.load %arg1[%c2] : memref<3xf32, #tpu.memory_space<smem>>
    %13 = vector.extract_strided_slice %1 {offsets = [0, 16], sizes = [1, 240], strides = [1, 1]} : vector<1x256xf32> to vector<1x240xf32>
    %cst_4 = arith.constant 0.000000e+00 : f32
    %14 = vector.broadcast %cst_4 : f32 to vector<1x16xf32>
    %15 = tpu.concatenate %13, %14 in 1 : vector<1x240xf32>, vector<1x16xf32> -> vector<1x256xf32>
    %16 = vector.broadcast %12 : f32 to vector<1x256xf32>
    %17 = arith.mulf %16, %15 : vector<1x256xf32>
    %18 = arith.addf %11, %17 : vector<1x256xf32>
    %19 = tpu.iota {dimensions = array<i32: 1>} : vector<1x256xi32>
    %c16_i32 = arith.constant 16 : i32
    %c0_i32 = arith.constant 0 : i32
    %20 = arith.cmpi eq, %c16_i32, %c0_i32 : i32
    %c1_i32 = arith.constant 1 : i32
    %21 = arith.select %20, %c1_i32, %c16_i32 : i32
    %22 = vector.broadcast %21 : i32 to vector<1x256xi32>
    %23 = arith.remsi %19, %22 : vector<1x256xi32>
    %c0_i32_5 = arith.constant 0 : i32
    %24 = vector.broadcast %c0_i32_5 : i32 to vector<1x256xi32>
    %25 = arith.cmpi ne, %23, %24 : vector<1x256xi32>
    %c0_i32_6 = arith.constant 0 : i32
    %26 = vector.broadcast %c0_i32_6 : i32 to vector<1x256xi32>
    %27 = arith.cmpi slt, %23, %26 : vector<1x256xi32>
    %c0_i32_7 = arith.constant 0 : i32
    %28 = arith.cmpi slt, %21, %c0_i32_7 : i32
    %29 = vector.broadcast %28 : i1 to vector<1x256xi1>
    %30 = vector.broadcast %29 : vector<1x256xi1> to vector<1x256xi1>
    %31 = arith.xori %27, %30 : vector<1x256xi1>
    %32 = arith.andi %31, %25 : vector<1x256xi1>
    %33 = vector.broadcast %21 : i32 to vector<1x256xi32>
    %34 = arith.addi %23, %33 : vector<1x256xi32>
    %35 = arith.select %32, %34, %23 : vector<1x256xi1>, vector<1x256xi32>
    %c1_8 = arith.constant 1 : index
    %36 = memref.load %arg1[%c1_8] : memref<3xf32, #tpu.memory_space<smem>>
    %37 = vector.broadcast %36 : f32 to vector<1x256xf32>
    %38 = arith.mulf %37, %18 : vector<1x256xf32>
    %cst_9 = arith.constant 0.000000e+00 : f32
    %39 = vector.broadcast %cst_9 : f32 to vector<1x1xf32>
    %40 = vector.extract_strided_slice %18 {offsets = [0, 0], sizes = [1, 255], strides = [1, 1]} : vector<1x256xf32> to vector<1x255xf32>
    %41 = tpu.concatenate %39, %40 in 1 : vector<1x1xf32>, vector<1x255xf32> -> vector<1x256xf32>
    %c1_i32_10 = arith.constant 1 : i32
    %42 = vector.broadcast %c1_i32_10 : i32 to vector<1x256xi32>
    %43 = arith.cmpi sge, %35, %42 : vector<1x256xi32>
    %cst_11 = arith.constant 0.000000e+00 : f32
    %44 = vector.broadcast %cst_11 : f32 to vector<1x256xf32>
    %45 = arith.select %43, %41, %44 : vector<1x256xi1>, vector<1x256xf32>
    %c0_12 = arith.constant 0 : index
    %46 = memref.load %arg1[%c0_12] : memref<3xf32, #tpu.memory_space<smem>>
    %47 = vector.broadcast %46 : f32 to vector<1x256xf32>
    %48 = arith.mulf %47, %45 : vector<1x256xf32>
    %49 = arith.addf %38, %48 : vector<1x256xf32>
    %50 = vector.extract_strided_slice %18 {offsets = [0, 1], sizes = [1, 255], strides = [1, 1]} : vector<1x256xf32> to vector<1x255xf32>
    %cst_13 = arith.constant 0.000000e+00 : f32
    %51 = vector.broadcast %cst_13 : f32 to vector<1x1xf32>
    %52 = tpu.concatenate %50, %51 in 1 : vector<1x255xf32>, vector<1x1xf32> -> vector<1x256xf32>
    %c15_i32 = arith.constant 15 : i32
    %53 = vector.broadcast %c15_i32 : i32 to vector<1x256xi32>
    %54 = arith.cmpi slt, %35, %53 : vector<1x256xi32>
    %cst_14 = arith.constant 0.000000e+00 : f32
    %55 = vector.broadcast %cst_14 : f32 to vector<1x256xf32>
    %56 = arith.select %54, %52, %55 : vector<1x256xi1>, vector<1x256xf32>
    %c2_15 = arith.constant 2 : index
    %57 = memref.load %arg1[%c2_15] : memref<3xf32, #tpu.memory_space<smem>>
    %58 = vector.broadcast %57 : f32 to vector<1x256xf32>
    %59 = arith.mulf %58, %56 : vector<1x256xf32>
    %60 = arith.addf %49, %59 : vector<1x256xf32>
    %c0_16 = arith.constant 0 : index
    %c0_17 = arith.constant 0 : index
    %61 = vector.load %arg2[%c0_16, %c0_17] : memref<4x1xf32, #tpu.memory_space<vmem>>, vector<4x1xf32>
    %62 = vector.shape_cast %60 : vector<1x256xf32> to vector<1x1x256xf32>
    %63 = vector.shape_cast %61 : vector<4x1xf32> to vector<1x4x1xf32>
    %64 = vector.broadcast %62 : vector<1x1x256xf32> to vector<1x4x256xf32>
    %65 = vector.broadcast %63 : vector<1x4x1xf32> to vector<1x4x256xf32>
    %66 = arith.addf %64, %65 : vector<1x4x256xf32>
    %c0_18 = arith.constant 0 : index
    %c0_19 = arith.constant 0 : index
    %c0_20 = arith.constant 0 : index
    %67 = vector.load %arg4[%c0_18, %c0_19, %c0_20] : memref<1x4x256xf32, #tpu.memory_space<vmem>>, vector<1x4x256xf32>
    tpu.vector_store %arg4[%c0_18, %c0_19, %c0_20], %66 {strides = array<i32>} : memref<1x4x256xf32, #tpu.memory_space<vmem>>, vector<1x4x256xf32>,
    return
  }
  func.func @transform_0(%arg0: i32) -> i32 {
    %c0_i32 = arith.constant 0 : i32
    %c0_i32_0 = arith.constant 0 : i32
    return %c0_i32 : i32
  }
  func.func @transform_1(%arg0: i32) -> (i32, i32) {
    %c0_i32 = arith.constant 0 : i32
    %c0_i32_0 = arith.constant 0 : i32
    %c0_i32_1 = arith.constant 0 : i32
    return %c0_i32, %c0_i32_0 : i32, i32
  }
  func.func @transform_2(%arg0: i32) -> (i32, i32, i32) {
    %c0_i32 = arith.constant 0 : i32
    %c0_i32_0 = arith.constant 0 : i32
    %c0_i32_1 = arith.constant 0 : i32
    return %arg0, %c0_i32, %c0_i32_0 : i32, i32, i32
  }
  func.func @transform_3(%arg0: i32) -> (i32, i32, i32) {
    %c0_i32 = arith.constant 0 : i32
    %c0_i32_0 = arith.constant 0 : i32
    %c0_i32_1 = arith.constant 0 : i32
    return %arg0, %c0_i32, %c0_i32_0 : i32, i32, i32
  }
}

</mosaic_0001>

<llo_original>
// kernel: tpu_custom_call.1
$region0: #{tpu_custom_call.1}
  #allocation0 [shape = 'u32[]', space=smem, size = 0x4, offset = 0x4, fixed_abs, tag = 'smem constant byte address 0x4 - core index']
  #allocation1 [shape = 'u32[144,128]{1,0:T(1,128)}', space=vmem, size = 0x12000, scoped, tag = 'internal scratch']
  %s0 = inlined_call_operand.vmem [shape: f32[3], index: 0, kind: input, shape index: {}]
  %s1 = inlined_call_operand.vmem [shape: f32[4,1], index: 1, kind: input, shape index: {}]
  %s2 = inlined_call_operand.hbm [shape: f32[2,4,256], index: 2, kind: input, shape index: {}]
  %s3 = inlined_call_operand.hbm [shape: f32[2,4,256], index: 3, kind: output, shape index: {}]
  %s4 = sld [smem:[#allocation0]]
  $region53: #{tpu_custom_call.1} parent=0
    _
  %s6 = ssub.s32 1, %s4
  %s7 = scalar_select 0, %s6, %s4
  $region1: #{tpu_custom_call.1} parent=0
    #allocation2 [shape = 'u8[512]{0}', space=smem, size = 0x200, scoped, tag = 'input window, operand 0, single buffered']
    #allocation3 [shape = 's32[2]{0}', space=sflag, size = 0x8, scoped, tag = 'scoped memory for tpu_custom_call.1']
    #allocation4 [shape = 's32[2]{0}', space=sflag, size = 0x8, scoped, tag = 'scoped memory for tpu_custom_call.1']
    #allocation5 [shape = 's32[2]{0}', space=sflag, size = 0x8, scoped, tag = 'scoped memory for tpu_custom_call.1']
    #allocation6 [shape = 'u8[8192]{0}', space=vmem, size = 0x2000, scoped, tag = 'input window, operand 2']
    #allocation7 [shape = 'u8[8192]{0}', space=vmem, size = 0x2000, scoped, tag = 'output window, operand 0']
    %8 = vsyncpa [#allocation5], 0
    %9 = vsyncpa [#allocation3], 0
    %s10 = scalar_lea.sflag [#allocation3], 1
    %11 = vsyncpa %s10, 0
    %12 = vsyncpa [#allocation4], 0
    %s13 = scalar_lea.sflag [#allocation4], 1
    %14 = vsyncpa %s13, 0
    loop: start=0, step=1, limit=4
    $region2: #{tpu_custom_call.1} parent=1 // loop_pre_header
      _
    $region3: #{tpu_custom_call.1} parent=1 // loop_header
      %s16 = sphi 0, %s20
      %p17 = scmp.ge.s32.totalorder %s16, 4
      %s24 = sphi 0, %s24
      %s26 = sphi 0, %s24
      %s27 = sphi 0, %s26
      %s41 = sphi 0, %s27
      %s45 = sphi 0, %s45
      %s47 = sphi 0, %s45
      %s48 = sphi 0, %s47
      %s62 = sphi 0, %s48
      %s68 = sphi 0, %s70
      %s71 = sphi 0, %s68
      %s72 = sphi 0, %s71
      %s88 = sphi 0, %s72
      %s94 = sphi 0, %s96
      %s97 = sphi 0, %s94
      %s98 = sphi 0, %s97
      %s114 = sphi 0, %s98
    $region4: #{tpu_custom_call.1} parent=1 // loop_header_branch
      %19 = sbr.rel (%p17) target = $region8
    $region5: #{tpu_custom_call.1} parent=1 // loop_body
      %s21 = ssub.s32 %s16, 1
      %s22 = ssub.s32 %s16, 2
      %s23 = sadd.s32 %s16, 1
      %s25 = sadd.s32 %s24, 1
      %p28 = scmp.eq.s32.totalorder %s16, 1
      %p29 = scmp.ne.s32.totalorder %s24, %s26
      %p30 = scmp.eq.s32.totalorder %s16, 0
      %p31 = por %p29, %p30
      %p32 = scmp.ne.s32.totalorder %s24, %s26
      %p33 = scmp.eq.s32.totalorder %s21, 1
      %p34 = por %p32, %p33
      %p35 = scmp.ne.s32.totalorder %s26, %s27
      %p36 = scmp.eq.s32.totalorder %s21, 0
      %p37 = por %p35, %p36
      %p38 = scmp.ne.s32.totalorder %s26, %s27
      %p39 = scmp.eq.s32.totalorder %s22, 1
      %p40 = por %p38, %p39
      %p42 = scmp.ne.s32.totalorder %s27, %s41
      %p43 = scmp.eq.s32.totalorder %s22, 0
      %p44 = por %p42, %p43
      %s46 = sadd.s32 %s45, 1
      %p49 = scmp.eq.s32.totalorder %s16, 1
      %p50 = scmp.ne.s32.totalorder %s45, %s47
      %p51 = scmp.eq.s32.totalorder %s16, 0
      %p52 = por %p50, %p51
      %p53 = scmp.ne.s32.totalorder %s45, %s47
      %p54 = scmp.eq.s32.totalorder %s21, 1
      %p55 = por %p53, %p54
      %p56 = scmp.ne.s32.totalorder %s47, %s48
      %p57 = scmp.eq.s32.totalorder %s21, 0
      %p58 = por %p56, %p57
      %p59 = scmp.ne.s32.totalorder %s47, %s48
      %p60 = scmp.eq.s32.totalorder %s22, 1
      %p61 = por %p59, %p60
      %p63 = scmp.ne.s32.totalorder %s48, %s62
      %p64 = scmp.eq.s32.totalorder %s22, 0
      %p65 = por %p63, %p64
      %s66 = ssub.s32 %s16, %s23
      %p67 = scmp.eq.s32.totalorder %s66, 0
      %s69 = sadd.s32 %s68, 1
      %s70 = scalar_select %p67, %s68, %s69
      %p73 = pneg %p67
      %p74 = scmp.eq.s32.totalorder %s16, 1
      %p75 = por %p73, %p74
      %p76 = scmp.ne.s32.totalorder %s68, %s71
      %p77 = scmp.eq.s32.totalorder %s16, 0
      %p78 = por %p76, %p77
      %p79 = scmp.ne.s32.totalorder %s68, %s71
      %p80 = scmp.eq.s32.totalorder %s21, 1
      %p81 = por %p79, %p80
      %p82 = scmp.ne.s32.totalorder %s71, %s72
      %p83 = scmp.eq.s32.totalorder %s21, 0
      %p84 = por %p82, %p83
      %p85 = scmp.ne.s32.totalorder %s71, %s72
      %p86 = scmp.eq.s32.totalorder %s22, 1
      %p87 = por %p85, %p86
      %p89 = scmp.ne.s32.totalorder %s72, %s88
      %p90 = scmp.eq.s32.totalorder %s22, 0
      %p91 = por %p89, %p90
      %s92 = ssub.s32 %s16, %s23
      %p93 = scmp.eq.s32.totalorder %s92, 0
      %s95 = sadd.s32 %s94, 1
      %s96 = scalar_select %p93, %s94, %s95
      %p99 = pneg %p93
      %p100 = scmp.eq.s32.totalorder %s16, 1
      %p101 = por %p99, %p100
      %p102 = scmp.ne.s32.totalorder %s94, %s97
      %p103 = scmp.eq.s32.totalorder %s16, 0
      %p104 = por %p102, %p103
      %p105 = scmp.ne.s32.totalorder %s94, %s97
      %p106 = scmp.eq.s32.totalorder %s21, 1
      %p107 = por %p105, %p106
      %p108 = scmp.ne.s32.totalorder %s97, %s98
      %p109 = scmp.eq.s32.totalorder %s21, 0
      %p110 = por %p108, %p109
      %p111 = scmp.ne.s32.totalorder %s97, %s98
      %p112 = scmp.eq.s32.totalorder %s22, 1
      %p113 = por %p111, %p112
      %p115 = scmp.ne.s32.totalorder %s98, %s114
      %p116 = scmp.eq.s32.totalorder %s22, 0
      %p117 = por %p115, %p116
      %p118 = scmp.le.s32.totalorder 1, %s16
      %p119 = scmp.lt.s32.totalorder %s16, 3
      %p120 = pnand %p118, %p119
      %p121 = pneg %p120
      // Predicated region
      $region9: #{tpu_custom_call.1} parent=5 // pred_check
        _
      $region10: #{tpu_custom_call.1} parent=5 // pred_check_branch
        %123 = sbr.rel (%p120) target = $region12
      $region11: #{tpu_custom_call.1} parent=5 // pred_region
        %s124 = ssub.s32 %s16, 1
        // Predicated region
        $region13: #{tpu_custom_call.1} parent=11 // pred_check
          %p125 = pneg %p37
        $region14: #{tpu_custom_call.1} parent=11 // pred_check_branch
          %127 = sbr.rel (%p125) target = $region16
        $region15: #{tpu_custom_call.1} parent=11 // pred_region
          %s129 = ssub.s32 16, 16
          %130 = vsyncadd [#allocation5], %s129
          %s132 = sshll.u32 %s0, 4
          %s133 = int_to_ptr.vmem [resolvable:$true] %s132
          %135 = dma.vmem_to_smem %s133, 16, [#allocation2], [#allocation5]
        $region16: #{tpu_custom_call.1} parent=11 // pred_fallthru
          _
        // Predicated region
        $region17: #{tpu_custom_call.1} parent=11 // pred_check
          %p136 = pneg %p58
        $region18: #{tpu_custom_call.1} parent=11 // pred_check_branch
          %138 = sbr.rel (%p136) target = $region20
        $region19: #{tpu_custom_call.1} parent=11 // pred_region
          _
        $region20: #{tpu_custom_call.1} parent=11 // pred_fallthru
          _
      $region12: #{tpu_custom_call.1} parent=5 // pred_fallthru
        _
      %p139 = scmp.lt.s32.totalorder %s16, 2
      // Predicated region
      $region21: #{tpu_custom_call.1} parent=5 // pred_check
        %p140 = pneg %p139
      $region22: #{tpu_custom_call.1} parent=5 // pred_check_branch
        %142 = sbr.rel (%p140) target = $region24
      $region23: #{tpu_custom_call.1} parent=5 // pred_region
        // Predicated region
        $region25: #{tpu_custom_call.1} parent=23 // pred_check
          %p143 = pneg %p78
        $region26: #{tpu_custom_call.1} parent=23 // pred_check_branch
          %145 = sbr.rel (%p143) target = $region28
        $region27: #{tpu_custom_call.1} parent=23 // pred_region
          %s146 = sand.u32 %s68, 1
          %s147 = scalar_lea.sflag [#allocation3], %s146
          %s148 = sand.u32 %s68, 1
          %s149 = smul.addr %s148, 8
          %s150 = scalar_lea.vmem [#allocation6], %s149
          %s152 = ssub.s32 128, 128
          %153 = vsyncadd %s147, %s152
          %s154 = smul.addr %s16, 2
          %s155 = smul.addr %s154, 64
          %s156 = scalar_lea.hbm %s2, %s155
          %s158 = sshll.u32 %s150, 4
          %s159 = int_to_ptr.vmem [resolvable:$true] %s158
          %161 = dma.hbm_to_vmem [thread:$0]  %s156, 128, %s159, %s147
        $region28: #{tpu_custom_call.1} parent=23 // pred_fallthru
          _
      $region24: #{tpu_custom_call.1} parent=5 // pred_fallthru
        _
      %p162 = scmp.le.s32.totalorder 1, %s16
      %p163 = scmp.lt.s32.totalorder %s16, 3
      %p164 = pnand %p162, %p163
      %p165 = pneg %p164
      // Predicated region
      $region29: #{tpu_custom_call.1} parent=5 // pred_check
        _
      $region30: #{tpu_custom_call.1} parent=5 // pred_check_branch
        %167 = sbr.rel (%p164) target = $region32
      $region31: #{tpu_custom_call.1} parent=5 // pred_region
        %s168 = ssub.s32 %s16, 1
        // Predicated region
        $region33: #{tpu_custom_call.1} parent=31 // pred_check
          %p169 = pneg %p37
        $region34: #{tpu_custom_call.1} parent=31 // pred_check_branch
          %171 = sbr.rel (%p169) target = $region36
        $region35: #{tpu_custom_call.1} parent=31 // pred_region
          %172 = dma.done [#allocation5], 16
        $region36: #{tpu_custom_call.1} parent=31 // pred_fallthru
          _
        %s173 = sand.u32 %s71, 1
        %s174 = scalar_lea.sflag [#allocation3], %s173
        %s175 = sand.u32 %s71, 1
        %s176 = smul.addr %s175, 8
        %s177 = scalar_lea.vmem [#allocation6], %s176
        // Predicated region
        $region37: #{tpu_custom_call.1} parent=31 // pred_check
          %p178 = pneg %p84
        $region38: #{tpu_custom_call.1} parent=31 // pred_check_branch
          %180 = sbr.rel (%p178) target = $region40
        $region39: #{tpu_custom_call.1} parent=31 // pred_region
          %181 = dma.done %s174, 128
        $region40: #{tpu_custom_call.1} parent=31 // pred_fallthru
          _
        %182 = sfence
        %p183 = pneg %p37
        %p184 = pneg %p34
        %p185 = pneg %p58
        %p186 = pneg %p55
        %s187 = sand.u32 %s71, 1
        %s188 = scalar_lea.sflag [#allocation3], %s187
        %s189 = sand.u32 %s71, 1
        %s190 = smul.addr %s189, 8
        %s191 = scalar_lea.vmem [#allocation6], %s190
        %p192 = pneg %p84
        %p193 = pneg %p81
        %p194 = pneg %p110
        %p195 = pneg %p107
        %s196 = sand.u32 %s97, 1
        %s197 = scalar_lea.sflag [#allocation4], %s196
        %s198 = sand.u32 %s97, 1
        %s199 = smul.addr %s198, 8
        %s200 = scalar_lea.vmem [#allocation7], %s199
        %v201 = vld [vmem:[%s177] sm:$0xff]
        %v203 = vcombine.high %v201, %v201
        %vm205 = vcmask 1043456
        %v206 = vsel %vm205, %v201, 0.0
        %v207 = vrot.slane %v206, 4
        %v208 = vadd.f32 %v206, %v207
        %v209 = vrot.slane %v208, 2
        %v210 = vadd.f32 %v208, %v209
        %v211 = vrot.slane %v210, 1
        %v212 = vadd.f32 %v210, %v211
        %v213 = vsel %vm205, %v203, 0.0
        %v214 = vrot.slane %v213, 4
        %v215 = vadd.f32 %v213, %v214
        %v216 = vrot.slane %v215, 2
        %v217 = vadd.f32 %v215, %v216
        %v218 = vrot.slane %v217, 1
        %v219 = vadd.f32 %v217, %v218
        %s220 = sld [smem:[#allocation2 + $0x1]]
        %v221 = vstv %s220
        %v222 = vmul.f32 %v221, %v212
        %v223 = vmul.f32 %v221, %v219
        %s224 = sld [smem:[#allocation2]]
        %227 = vrot.lane.b32.xlu0 %v212, 16
        %v228 = vpop.permute.xlu0 %227
        %229 = vrot.lane.b32.xlu0 %v219, 16
        %v230 = vpop.permute.xlu0 %229
        %vm231 = vcmask 130048
        %v232 = vsel %vm231, %v228, %v230
        %v235 = vsel %vm231, 0.0, %v228
        %v236 = vstv %s224
        %v237 = vmul.f32 %v236, %v235
        %v238 = vmul.f32 %v236, %v232
        %v239 = vadd.f32 %v222, %v237
        %v240 = vadd.f32 %v223, %v238
        %s241 = sld [smem:[#allocation2 + $0x2]]
        %242 = vrot.lane.b32.xlu0 %v212, 112
        %v243 = vpop.permute.xlu0 %242
        %244 = vrot.lane.b32.xlu0 %v219, 112
        %v245 = vpop.permute.xlu0 %244
        %vm246 = vcmask 916480
        %v247 = vsel %vm246, %v243, %v245
        %v250 = vsel %vm246, %v245, 0.0
        %v251 = vstv %s241
        %v252 = vmul.f32 %v251, %v247
        %v253 = vmul.f32 %v251, %v250
        %v254 = vadd.f32 %v239, %v252
        %v255 = vadd.f32 %v240, %v253
        %v256 = vlaneseq
        %v257 = vand.u32 %v256, 127
        %v258 = vadd.s32 %v257, 128
        %vm259 = vcmp.lt.s32.totalorder %v257, 0
        %v260 = vsub.s32 0, %v257
        %v261 = vsel %vm259, %v260, %v257
        %v262 = vshrl.u32 %v261, 4
        %v263 = vand.u32 %v261, 15
        %v264 = vsub.s32 0, %v263
        %v265 = vsel %vm259, %v264, %v263
        %vm266 = vcmp.lt.s32.totalorder %v258, 0
        %v267 = vsub.s32 0, %v258
        %v268 = vsel %vm266, %v267, %v258
        %v269 = vshrl.u32 %v268, 4
        %v270 = vand.u32 %v268, 15
        %v271 = vsub.s32 0, %v270
        %v272 = vsel %vm266, %v271, %v270
        %vm273 = vcmp.ne.s32.totalorder %v265, 0
        %vm274 = vcmp.ne.s32.totalorder %v272, 0
        %vm275 = vcmp.lt.s32.totalorder %v265, 0
        %vm276 = vcmp.lt.s32.totalorder %v272, 0
        %vm277 = vmand %vm275, %vm273
        %vm278 = vmand %vm276, %vm274
        %v279 = vadd.s32 %v265, 16
        %v280 = vadd.s32 %v272, 16
        %v281 = vsel %vm277, %v279, %v265
        %v282 = vsel %vm278, %v280, %v272
        %v283 = vmul.f32 %v221, %v254
        %v284 = vmul.f32 %v221, %v255
        %287 = vrot.lane.b32.xlu0 %v254, 1
        %v288 = vpop.permute.xlu0 %287
        %289 = vrot.lane.b32.xlu0 %v255, 1
        %v290 = vpop.permute.xlu0 %289
        %vm291 = vcmask 7168
        %v292 = vsel %vm291, %v288, %v290
        %v295 = vsel %vm291, 0.0, %v288
        %vm296 = vcmp.ge.s32.totalorder %v281, 1
        %vm297 = vcmp.ge.s32.totalorder %v282, 1
        %v298 = vsel %vm296, %v295, 0.0
        %v299 = vsel %vm297, %v292, 0.0
        %v300 = vmul.f32 %v236, %v298
        %v301 = vmul.f32 %v236, %v299
        %v302 = vadd.f32 %v283, %v300
        %v303 = vadd.f32 %v284, %v301
        %304 = vrot.lane.b32.xlu0 %v254, 127
        %v305 = vpop.permute.xlu0 %304
        %306 = vrot.lane.b32.xlu0 %v255, 127
        %v307 = vpop.permute.xlu0 %306
        %vm308 = vcmask 1039360
        %v309 = vsel %vm308, %v305, %v307
        %v312 = vsel %vm308, %v307, 0.0
        %vm313 = vcmp.lt.s32.totalorder %v281, 15
        %vm314 = vcmp.lt.s32.totalorder %v282, 15
        %v315 = vsel %vm313, %v309, 0.0
        %v316 = vsel %vm314, %v312, 0.0
        %v317 = vmul.f32 %v251, %v315
        %v318 = vmul.f32 %v251, %v316
        %v319 = vadd.f32 %v302, %v317
        %v320 = vadd.f32 %v303, %v318
        %v321 = vld [vmem:[%s1] sm:$0xf]
        %v322 = vlaneseq
        %v323 = vshrl.u32 %v322, 7
        %v324 = vsub.s32 0, %v323
        %v325 = vrot.slane %v319, %v324
        %v326 = vlaneseq
        %v327 = vshrl.u32 %v326, 7
        %v328 = vsub.s32 0, %v327
        %v329 = vrot.slane %v320, %v328
        %331 = vset.pattern.permute.xlu0 0
        %332 = vperm.xlu0 %331, %v321
        %v333 = vpop.permute.xlu0 %332
        %v335 = vadd.f32 %v325, %v333
        %v336 = vadd.f32 %v329, %v333
        %v339 = vcombine.low %v335, %v336
        %341 = vst [vmem:[%s200] sm:$0xff] %v339
        %s342 = sand.u32 %s97, 1
        %s343 = scalar_lea.sflag [#allocation4], %s342
        %s344 = sand.u32 %s97, 1
        %s345 = smul.addr %s344, 8
        %s346 = scalar_lea.vmem [#allocation7], %s345
        // Predicated region
        $region41: #{tpu_custom_call.1} parent=31 // pred_check
          %p347 = pneg %p107
        $region42: #{tpu_custom_call.1} parent=31 // pred_check_branch
          %349 = sbr.rel (%p347) target = $region44
        $region43: #{tpu_custom_call.1} parent=31 // pred_region
          %s351 = ssub.s32 128, 128
          %352 = vsyncadd %s343, %s351
          %s353 = smul.addr %s21, 2
          %s354 = smul.addr %s353, 64
          %s355 = scalar_lea.hbm %s3, %s354
          %s357 = sshll.u32 %s346, 4
          %s358 = int_to_ptr.vmem [resolvable:$true] %s357
          %360 = dma.vmem_to_hbm [thread:$0]  %s358, 128, %s355, %s343
        $region44: #{tpu_custom_call.1} parent=31 // pred_fallthru
          _
      $region32: #{tpu_custom_call.1} parent=5 // pred_fallthru
        _
      %p361 = scmp.le.s32.totalorder 2, %s16
      // Predicated region
      $region45: #{tpu_custom_call.1} parent=5 // pred_check
        %p362 = pneg %p361
      $region46: #{tpu_custom_call.1} parent=5 // pred_check_branch
        %364 = sbr.rel (%p362) target = $region48
      $region47: #{tpu_custom_call.1} parent=5 // pred_region
        %s365 = ssub.s32 %s16, 2
        // Predicated region
        $region49: #{tpu_custom_call.1} parent=47 // pred_check
          %p366 = pneg %p113
        $region50: #{tpu_custom_call.1} parent=47 // pred_check_branch
          %368 = sbr.rel (%p366) target = $region52
        $region51: #{tpu_custom_call.1} parent=47 // pred_region
          %s369 = sand.u32 %s98, 1
          %s370 = scalar_lea.sflag [#allocation4], %s369
          %s371 = sand.u32 %s98, 1
          %s372 = smul.addr %s371, 8
          %s373 = scalar_lea.vmem [#allocation7], %s372
          %374 = dma.done %s370, 128
        $region52: #{tpu_custom_call.1} parent=47 // pred_fallthru
          _
      $region48: #{tpu_custom_call.1} parent=5 // pred_fallthru
        _
    $region6: #{tpu_custom_call.1} parent=1 // loop_footer
      %s20 = sadd.s32 1, %s16
    $region7: #{tpu_custom_call.1} parent=1 // loop_footer_branch
      %15 = sbr.rel target = $region3
    $region8: #{tpu_custom_call.1} parent=1 // loop_exit
      _
    %375 = vsyncpa [#allocation3], 1
    %s376 = scalar_lea.sflag [#allocation3], 1
    %377 = vsyncpa %s376, 1
    %378 = vsyncpa [#allocation4], 1
    %s379 = scalar_lea.sflag [#allocation4], 1
    %380 = vsyncpa %s379, 1
    %381 = vsyncpa [#allocation5], 1
    %s382 = scalar_lea.sflag [#allocation5], 1
    %383 = vsyncpa %s382, 1

</llo_original>
